<compile_context>
chip_gen: v6e
topology: v6e:2x2x1
jax: 0.10.0
libtpu: 0.0.40
codegen_flags: <defaults>
</compile_context>

<pallas_src>
import functools

import jax
import jax.numpy as jnp
import numpy as np
from jax import lax
from jax.experimental import pallas as pl
from jax.experimental.pallas import tpu as pltpu


# --------------------------------------------------------------------------
# Fused kernel: one (batch, head) pair per grid step.
#   q = x @ Wq[h]^T + bq[h] ; k = x @ Wk[h]^T + bk[h]
#   band-only masked softmax  ->  phrasal (S,S)  and  attn (S,S)
# --------------------------------------------------------------------------
def _phrasal_kernel(mrow_ref, mcol_ref, x_ref, wq_ref, bq_ref, wk_ref, bk_ref,
                    attn_ref, phr_ref, *, inv_d_model, prior_attn):
    S = x_ref.shape[0]
    eps = jnp.float32(1e-9)
    neg = jnp.float32(-1e9)
    unif = jnp.float32(1.0 / S)

    # ---- per-head Q/K projection (fused; NT matmul on the MXU) ----
    x = x_ref[...]                                              # (S, d_model)
    dn = (((1,), (1,)), ((), ()))
    # TODO(synk): optionally cast x / W to bf16 here on v6e/v7x (3-4x MXU) once
    # the accuracy budget allows it.
    q = lax.dot_general(x, wq_ref[...], dn,
                        preferred_element_type=jnp.float32) + bq_ref[...]
    k = lax.dot_general(x, wk_ref[...], dn,
                        preferred_element_type=jnp.float32) + bk_ref[...]

    # ---- band-only scores: only the super/sub diagonal of QK^T survive the
    # tri-diagonal mask, so compute just those two length-S vectors. ----
    k_next = pltpu.roll(k, shift=S - 1, axis=0)                 # k_next[i] = k[i+1]
    k_prev = pltpu.roll(k, shift=1, axis=0)                     # k_prev[i] = k[i-1]
    sp = jnp.sum(q * k_next, axis=-1, keepdims=True) * inv_d_model   # scores[i,i+1]
    sm = jnp.sum(q * k_prev, axis=-1, keepdims=True) * inv_d_model   # scores[i,i-1]

    ridx = lax.broadcasted_iota(jnp.int32, (S, 1), 0)
    cidx = lax.broadcasted_iota(jnp.int32, (1, S), 1)
    mcol = mcol_ref[...]                                        # (S, 1) int32
    mrow = mrow_ref[...]                                        # (1, S) int32
    vp = jnp.logical_and(ridx < S - 1,
                         pltpu.roll(mcol, shift=S - 1, axis=0) != 0)  # col i+1 valid
    vm = jnp.logical_and(ridx > 0,
                         pltpu.roll(mcol, shift=1, axis=0) != 0)      # col i-1 valid
    fm_col = jnp.logical_not(jnp.logical_or(vp, vm))            # fully-masked row
    vp_r = jnp.logical_and(cidx < S - 1,
                           pltpu.roll(mrow, shift=S - 1, axis=1) != 0)
    vm_r = jnp.logical_and(cidx > 0,
                           pltpu.roll(mrow, shift=1, axis=1) != 0)
    fm_row = jnp.logical_not(jnp.logical_or(vp_r, vm_r))        # same flag, (1,S)

    # 2-entry masked softmax per row.  This matches the reference full-row
    # softmax exactly: masked (-1e9) entries underflow to 0 after the
    # max-shifted exp, and fully masked rows are the uniform 1/S row.
    a = jnp.where(vp, sp, neg)
    b = jnp.where(vm, sm, neg)
    mx = jnp.maximum(a, b)
    ea = jnp.exp(a - mx)
    eb = jnp.exp(b - mx)
    denom = ea + eb                                             # >= 1 for normal rows
    s_plus = jnp.where(fm_col, unif, ea / denom)                # s[i, i+1]
    s_minus = jnp.where(fm_col, unif, eb / denom)               # s[i, i-1]

    # phrasal is symmetric; its band value is sqrt(s[i,i+1]*s[i+1,i] + 1e-9).
    s_minus_next = pltpu.roll(s_minus, shift=S - 1, axis=0)     # s[i+1, i]
    band = jnp.sqrt(s_plus * s_minus_next + eps)                # valid for i < S-1
    sdiag = jnp.where(fm_col, unif, jnp.float32(0.0))           # s[i, i]
    diag = jnp.sqrt(sdiag * sdiag + eps)                        # phrasal[i, i]
    # Off-band entries take only two values: both rows fully masked (uniform
    # product) or anything else (product underflows to exactly 0).
    off_far = jnp.sqrt(eps)
    off_near = jnp.sqrt(unif * unif + eps)

    pa = jnp.float32(prior_attn)
    om = jnp.float32(1.0 - prior_attn)
    band = pa + om * band
    diag = pa + om * diag
    off_far = pa + om * off_far
    off_near = pa + om * off_near

    rows = lax.broadcasted_iota(jnp.int32, (S, S), 0)
    cols = lax.broadcasted_iota(jnp.int32, (S, S), 1)
    after_m = cols == rows + 1
    prev_m = cols == rows - 1
    self_m = cols == rows
    upper_m = cols > rows

    off_phr = jnp.where(jnp.logical_and(fm_col, fm_row), off_near, off_far)
    band_prev = pltpu.roll(band, shift=1, axis=0)               # value at (i, i-1)
    phr_ref[...] = jnp.where(after_m, band,
                             jnp.where(prev_m, band_prev,
                                       jnp.where(self_m, diag, off_phr)))

    # attn off-diagonal: exp(Cm[max(i,j)] - Cm[min(i,j)]) with Cm the exclusive
    # cumulative sum of v[i] = log(phrasal[i,i+1] + 1e-9).  Keep the differenced
    # form (Cm ~ -20*S -> the factored form would overflow).
    v = jnp.where(ridx < S - 1, jnp.log(band + eps), jnp.float32(0.0))    # (S,1)
    cm_row = jnp.sum(v * upper_m.astype(jnp.float32), axis=0, keepdims=True)  # Cm[j]
    cm_col = jnp.sum(jnp.where(self_m, cm_row, 0.0), axis=1, keepdims=True)   # Cm[i]
    d = cm_row - cm_col                                         # Cm[j] - Cm[i]
    off_attn = jnp.exp(jnp.where(upper_m, d, -d)) + eps
    attn_ref[...] = jnp.where(self_m, diag, off_attn)


def phrasal_lexeme_attention(context, mask_row, mask_col, wq, bq, wk, bk, *,
                             d_model, prior_attn=0.0):
    """context: (bs, S, d_model); mask_row: (bs, 1, S); mask_col: (bs, S, 1);
    wq/wk: (head, d_q, d_model); bq/bk: (head, 1, d_q)."""
    bs, S, dm = context.shape
    head, d_q, _ = wq.shape
    kern = functools.partial(_phrasal_kernel,
                             inv_d_model=1.0 / float(d_model),
                             prior_attn=float(prior_attn))
    out_spec = pl.BlockSpec((pl.Squeezed(), pl.Squeezed(), S, S),
                            lambda bi, hi: (bi, hi, 0, 0))
    # TODO(synk): for very large S (>~1536) add a row-tile grid axis over the
    # (S,S) outputs; the O(S) band / Cm vectors are cheap to recompute per tile.
    # TODO(synk): for S < 128 a lane-dense (S, head*S) output slab would avoid
    # masked partial stores (mostly relevant on v5e).
    return pl.pallas_call(
        kern,
        grid=(bs, head),
        in_specs=[
            pl.BlockSpec((pl.Squeezed(), 1, S), lambda bi, hi: (bi, 0, 0)),
            pl.BlockSpec((pl.Squeezed(), S, 1), lambda bi, hi: (bi, 0, 0)),
            pl.BlockSpec((pl.Squeezed(), S, dm), lambda bi, hi: (bi, 0, 0)),
            pl.BlockSpec((pl.Squeezed(), d_q, dm), lambda bi, hi: (hi, 0, 0)),
            pl.BlockSpec((pl.Squeezed(), 1, d_q), lambda bi, hi: (hi, 0, 0)),
            pl.BlockSpec((pl.Squeezed(), d_q, dm), lambda bi, hi: (hi, 0, 0)),
            pl.BlockSpec((pl.Squeezed(), 1, d_q), lambda bi, hi: (hi, 0, 0)),
        ],
        out_specs=(out_spec, out_spec),
        out_shape=(
            jax.ShapeDtypeStruct((bs, head, S, S), jnp.float32),
            jax.ShapeDtypeStruct((bs, head, S, S), jnp.float32),
        ),
        compiler_params=pltpu.CompilerParams(
            dimension_semantics=("parallel", "parallel"),
            # <= ~48 MiB so the same configuration also fits v7x's 64 MiB VMEM.
            vmem_limit_bytes=48 * 1024 * 1024,
        ),
    )(mask_row, mask_col, context, wq, bq, wk, bk)


# --------------------------------------------------------------------------
# Module wrapper (parameter setup + free reshapes only; no transposes)
# --------------------------------------------------------------------------
class PhrasalLexemeAttentionPallas:
    def __init__(self, head, d_model, d_q, d_kv, key):
        # The reference module reshapes linear_key's output with d_q, so the
        # forward only makes sense when d_q == d_kv.
        assert d_q == d_kv, "reference forward requires d_q == d_kv"
        self.head, self.d_model, self.d_q, self.d_kv = head, d_model, d_q, d_kv
        bound = 1.0 / np.sqrt(d_model)  # nn.Linear default init range
        kq, kqb, kk, kkb = jax.random.split(key, 4)
        self.wq = jax.random.uniform(kq, (head * d_q, d_model), jnp.float32,
                                     -bound, bound)
        self.bq = jax.random.uniform(kqb, (head * d_q,), jnp.float32, -bound, bound)
        self.wk = jax.random.uniform(kk, (head * d_kv, d_model), jnp.float32,
                                     -bound, bound)
        self.bk = jax.random.uniform(kkb, (head * d_kv,), jnp.float32, -bound, bound)
        # Per-head parameter views for the fused kernel (pure reshapes).
        self.wq_h = self.wq.reshape(head, d_q, d_model)
        self.bq_h = self.bq.reshape(head, 1, d_q)
        self.wk_h = self.wk.reshape(head, d_kv, d_model)
        self.bk_h = self.bk.reshape(head, 1, d_kv)

    def __call__(self, context, attention_mask=None, prior_attn=0.0):
        bs, S, _ = context.shape
        if attention_mask is None:
            mask = jnp.ones((bs, S), jnp.int32)
        else:
            mask = attention_mask.astype(jnp.int32).reshape(bs, S)
        mask_row = mask.reshape(bs, 1, S)
        mask_col = mask.reshape(bs, S, 1)
        # TODO(synk): prior_attn is supported only as a static scalar (the
        # reference default 0); a full (bs, head, S, S) prior would need an
        # extra kernel input.
        return phrasal_lexeme_attention(
            context.astype(jnp.float32), mask_row, mask_col,
            self.wq_h, self.bq_h, self.wk_h, self.bk_h,
            d_model=self.d_model, prior_attn=prior_attn)


# --------------------------------------------------------------------------
# Pure-JAX reference (mirrors the PyTorch forward) for verification
# --------------------------------------------------------------------------
def reference_forward(context, wq, bq, wk, bk, head, d_model, d_q,
                      attention_mask=None, prior_attn=0.0):
    bs, S, _ = context.shape
    after = jnp.eye(S, k=1, dtype=jnp.float32)
    prev = jnp.eye(S, k=-1, dtype=jnp.float32)
    selfm = jnp.eye(S, dtype=jnp.float32)
    summing = jnp.triu(jnp.ones((S, S), jnp.float32))
    if attention_mask is not None:
        am = attention_mask.astype(jnp.int32)[:, None, None, :] * (
            (after + prev) != 0).astype(jnp.int32)
    else:
        am = (after + prev)[None, None]
    keyp = (context @ wk.T + bk).reshape(bs, S, head, d_q).transpose(0, 2, 1, 3)
    qp = (context @ wq.T + bq).reshape(bs, S, head, d_q).transpose(0, 2, 1, 3)
    scores = qp @ jnp.swapaxes(keyp, -2, -1) / d_model
    scores = jnp.where(am == 0, -1e9, scores)
    scores = jax.nn.softmax(scores, axis=-1)
    phrasal = jnp.sqrt(scores * jnp.swapaxes(scores, -2, -1) + 1e-9)
    phrasal = prior_attn + (1.0 - prior_attn) * phrasal
    p = jnp.where(after == 0, 0.0, jnp.log(phrasal + 1e-9)) @ summing
    attn = jnp.exp(summing @ p)
    attn = jnp.where((summing - selfm) == 0, 0.0, attn)
    attn = attn + jnp.swapaxes(attn, -2, -1) + jnp.where(selfm == 0, 1e-9, phrasal)
    return attn, phrasal


if __name__ == "__main__":
    bs, seq_len, d_model, head, d_q = 2, 16, 32, 2, 8

    key = jax.random.PRNGKey(0)
    k_param, k_ctx, k_mask = jax.random.split(key, 3)
    module = PhrasalLexemeAttentionPallas(head, d_model, d_q, d_q, k_param)

    context = jax.random.normal(k_ctx, (bs, seq_len, d_model), jnp.float32)
    attention_mask = jnp.ones((bs, seq_len), jnp.int32)
    # mask the last 4 positions of batch 1 so that fully-masked padding rows
    # (and pairs of them) are exercised
    attention_mask = attention_mask.at[1, -4:].set(0)

    attn, phrasal = module(context, attention_mask=attention_mask)
    jax.block_until_ready((attn, phrasal))

    # verify against the pure-JAX reference (band-only softmax is exact; the
    # cumulative-sum rewrite reorders FP sums, hence the small tolerance)
    attn_ref, phrasal_ref = reference_forward(
        context, module.wq, module.bq, module.wk, module.bk,
        head, d_model, d_q, attention_mask=attention_mask)
    np.testing.assert_allclose(np.asarray(phrasal), np.asarray(phrasal_ref),
                               rtol=1e-3, atol=1e-6)
    np.testing.assert_allclose(np.asarray(attn), np.asarray(attn_ref),
                               rtol=1e-3, atol=1e-6)

    # also exercise the attention_mask=None path
    attn2, phrasal2 = module(context, attention_mask=None)
    jax.block_until_ready((attn2, phrasal2))
    attn2_ref, phrasal2_ref = reference_forward(
        context, module.wq, module.bq, module.wk, module.bk,
        head, d_model, d_q, attention_mask=None)
    np.testing.assert_allclose(np.asarray(phrasal2), np.asarray(phrasal2_ref),
                               rtol=1e-3, atol=1e-6)
    np.testing.assert_allclose(np.asarray(attn2), np.asarray(attn2_ref),
                               rtol=1e-3, atol=1e-6)

    print("KERNEL_OK")
</pallas_src>

<mosaic_0001>
module attributes {stable_mosaic.version = 11 : i64} {
  func.func @_phrasal_kernel(%arg0: i32, %arg1: i32, %arg2: memref<1x1x16xi32, #tpu.memory_space<vmem>>, %arg3: memref<1x16x1xi32, #tpu.memory_space<vmem>>, %arg4: memref<1x16x32xf32, #tpu.memory_space<vmem>>, %arg5: memref<1x8x32xf32, #tpu.memory_space<vmem>>, %arg6: memref<1x1x8xf32, #tpu.memory_space<vmem>>, %arg7: memref<1x8x32xf32, #tpu.memory_space<vmem>>, %arg8: memref<1x1x8xf32, #tpu.memory_space<vmem>>, %arg9: memref<1x1x16x16xf32, #tpu.memory_space<vmem>>, %arg10: memref<1x1x16x16xf32, #tpu.memory_space<vmem>>) attributes {dimension_semantics = [#tpu.dimension_semantics<parallel>, #tpu.dimension_semantics<parallel>], iteration_bounds = array<i64: 2, 2>, scalar_prefetch = 0 : i64, scratch_operands = 0 : i64, tpu.core_type = #tpu.core_type<tc>, window_params = [{transform_indices = @transform_0, window_bounds = array<i64: 1, 1, 16>}, {transform_indices = @transform_1, window_bounds = array<i64: 1, 16, 1>}, {transform_indices = @transform_2, window_bounds = array<i64: 1, 16, 32>}, {transform_indices = @transform_3, window_bounds = array<i64: 1, 8, 32>}, {transform_indices = @transform_4, window_bounds = array<i64: 1, 1, 8>}, {transform_indices = @transform_5, window_bounds = array<i64: 1, 8, 32>}, {transform_indices = @transform_6, window_bounds = array<i64: 1, 1, 8>}, {transform_indices = @transform_7, window_bounds = array<i64: 1, 1, 16, 16>}, {transform_indices = @transform_8, window_bounds = array<i64: 1, 1, 16, 16>}]} {
    %c0 = arith.constant 0 : index
    %c0_0 = arith.constant 0 : index
    %c0_1 = arith.constant 0 : index
    %0 = vector.load %arg4[%c0, %c0_0, %c0_1] : memref<1x16x32xf32, #tpu.memory_space<vmem>>, vector<1x16x32xf32>
    %1 = vector.shape_cast %0 : vector<1x16x32xf32> to vector<16x32xf32>
    %c0_2 = arith.constant 0 : index
    %c0_3 = arith.constant 0 : index
    %c0_4 = arith.constant 0 : index
    %2 = vector.load %arg5[%c0_2, %c0_3, %c0_4] : memref<1x8x32xf32, #tpu.memory_space<vmem>>, vector<1x8x32xf32>
    %3 = vector.shape_cast %2 : vector<1x8x32xf32> to vector<8x32xf32>
    %cst = arith.constant dense<0.000000e+00> : vector<16x8xf32>
    %4 = tpu.matmul %1, %3, %cst {dimension_numbers = #tpu.dot_dimension_numbers<[1], [1], [0], [0], [0, 0, 1, 0], [], []>} : vector<16x32xf32>, vector<8x32xf32>, vector<16x8xf32> -> vector<16x8xf32>
    %c0_5 = arith.constant 0 : index
    %c0_6 = arith.constant 0 : index
    %c0_7 = arith.constant 0 : index
    %5 = vector.load %arg6[%c0_5, %c0_6, %c0_7] : memref<1x1x8xf32, #tpu.memory_space<vmem>>, vector<1x1x8xf32>
    %6 = vector.shape_cast %5 : vector<1x1x8xf32> to vector<1x8xf32>
    %7 = vector.broadcast %6 : vector<1x8xf32> to vector<16x8xf32>
    %8 = arith.addf %4, %7 : vector<16x8xf32>
    %c0_8 = arith.constant 0 : index
    %c0_9 = arith.constant 0 : index
    %c0_10 = arith.constant 0 : index
    %9 = vector.load %arg7[%c0_8, %c0_9, %c0_10] : memref<1x8x32xf32, #tpu.memory_space<vmem>>, vector<1x8x32xf32>
    %10 = vector.shape_cast %9 : vector<1x8x32xf32> to vector<8x32xf32>
    %cst_11 = arith.constant dense<0.000000e+00> : vector<16x8xf32>
    %11 = tpu.matmul %1, %10, %cst_11 {dimension_numbers = #tpu.dot_dimension_numbers<[1], [1], [0], [0], [0, 0, 1, 0], [], []>} : vector<16x32xf32>, vector<8x32xf32>, vector<16x8xf32> -> vector<16x8xf32>
    %c0_12 = arith.constant 0 : index
    %c0_13 = arith.constant 0 : index
    %c0_14 = arith.constant 0 : index
    %12 = vector.load %arg8[%c0_12, %c0_13, %c0_14] : memref<1x1x8xf32, #tpu.memory_space<vmem>>, vector<1x1x8xf32>
    %13 = vector.shape_cast %12 : vector<1x1x8xf32> to vector<1x8xf32>
    %14 = vector.broadcast %13 : vector<1x8xf32> to vector<16x8xf32>
    %15 = arith.addf %11, %14 : vector<16x8xf32>
    %c15_i32 = arith.constant 15 : i32
    %16 = tpu.dynamic_rotate %15 by %c15_i32 dim 0 : vector<16x8xf32>, i32 -> vector<16x8xf32>
    %c1_i32 = arith.constant 1 : i32
    %17 = tpu.dynamic_rotate %15 by %c1_i32 dim 0 : vector<16x8xf32>, i32 -> vector<16x8xf32>
    %18 = arith.mulf %8, %16 : vector<16x8xf32>
    %cst_15 = arith.constant dense<0.000000e+00> : vector<16xf32>
    %19 = vector.multi_reduction <add>, %18, %cst_15 [1] : vector<16x8xf32> to vector<16xf32>
    %20 = vector.shape_cast %19 : vector<16xf32> to vector<16x1xf32>
    %cst_16 = arith.constant 3.125000e-02 : f32
    %21 = vector.broadcast %cst_16 : f32 to vector<16x1xf32>
    %22 = arith.mulf %20, %21 : vector<16x1xf32>
    %23 = arith.mulf %8, %17 : vector<16x8xf32>
    %cst_17 = arith.constant dense<0.000000e+00> : vector<16xf32>
    %24 = vector.multi_reduction <add>, %23, %cst_17 [1] : vector<16x8xf32> to vector<16xf32>
    %25 = vector.shape_cast %24 : vector<16xf32> to vector<16x1xf32>
    %cst_18 = arith.constant 3.125000e-02 : f32
    %26 = vector.broadcast %cst_18 : f32 to vector<16x1xf32>
    %27 = arith.mulf %25, %26 : vector<16x1xf32>
    %28 = tpu.iota {dimensions = array<i32: 0>} : vector<16x1xi32>
    %29 = tpu.iota {dimensions = array<i32: 1>} : vector<1x16xi32>
    %c0_19 = arith.constant 0 : index
    %c0_20 = arith.constant 0 : index
    %c0_21 = arith.constant 0 : index
    %30 = vector.load %arg3[%c0_19, %c0_20, %c0_21] : memref<1x16x1xi32, #tpu.memory_space<vmem>>, vector<1x16x1xi32>
    %31 = vector.shape_cast %30 : vector<1x16x1xi32> to vector<16x1xi32>
    %c0_22 = arith.constant 0 : index
    %c0_23 = arith.constant 0 : index
    %c0_24 = arith.constant 0 : index
    %32 = vector.load %arg2[%c0_22, %c0_23, %c0_24] : memref<1x1x16xi32, #tpu.memory_space<vmem>>, vector<1x1x16xi32>
    %33 = vector.shape_cast %32 : vector<1x1x16xi32> to vector<1x16xi32>
    %c15_i32_25 = arith.constant 15 : i32
    %34 = vector.broadcast %c15_i32_25 : i32 to vector<16x1xi32>
    %35 = arith.cmpi slt, %28, %34 : vector<16x1xi32>
    %c15_i32_26 = arith.constant 15 : i32
    %36 = tpu.dynamic_rotate %31 by %c15_i32_26 dim 0 : vector<16x1xi32>, i32 -> vector<16x1xi32>
    %c0_i32 = arith.constant 0 : i32
    %37 = vector.broadcast %c0_i32 : i32 to vector<16x1xi32>
    %38 = arith.cmpi ne, %36, %37 : vector<16x1xi32>
    %39 = arith.andi %35, %38 : vector<16x1xi1>
    %c0_i32_27 = arith.constant 0 : i32
    %40 = vector.broadcast %c0_i32_27 : i32 to vector<16x1xi32>
    %41 = arith.cmpi sgt, %28, %40 : vector<16x1xi32>
    %c1_i32_28 = arith.constant 1 : i32
    %42 = tpu.dynamic_rotate %31 by %c1_i32_28 dim 0 : vector<16x1xi32>, i32 -> vector<16x1xi32>
    %c0_i32_29 = arith.constant 0 : i32
    %43 = vector.broadcast %c0_i32_29 : i32 to vector<16x1xi32>
    %44 = arith.cmpi ne, %42, %43 : vector<16x1xi32>
    %45 = arith.andi %41, %44 : vector<16x1xi1>
    %46 = arith.ori %39, %45 : vector<16x1xi1>
    %cst_30 = arith.constant dense<true> : vector<16x1xi1>
    %47 = arith.xori %46, %cst_30 : vector<16x1xi1>
    %c15_i32_31 = arith.constant 15 : i32
    %48 = vector.broadcast %c15_i32_31 : i32 to vector<1x16xi32>
    %49 = arith.cmpi slt, %29, %48 : vector<1x16xi32>
    %c15_i32_32 = arith.constant 15 : i32
    %50 = tpu.dynamic_rotate %33 by %c15_i32_32 dim 1 : vector<1x16xi32>, i32 -> vector<1x16xi32>
    %c0_i32_33 = arith.constant 0 : i32
    %51 = vector.broadcast %c0_i32_33 : i32 to vector<1x16xi32>
    %52 = arith.cmpi ne, %50, %51 : vector<1x16xi32>
    %53 = arith.andi %49, %52 : vector<1x16xi1>
    %c0_i32_34 = arith.constant 0 : i32
    %54 = vector.broadcast %c0_i32_34 : i32 to vector<1x16xi32>
    %55 = arith.cmpi sgt, %29, %54 : vector<1x16xi32>
    %c1_i32_35 = arith.constant 1 : i32
    %56 = tpu.dynamic_rotate %33 by %c1_i32_35 dim 1 : vector<1x16xi32>, i32 -> vector<1x16xi32>
    %c0_i32_36 = arith.constant 0 : i32
    %57 = vector.broadcast %c0_i32_36 : i32 to vector<1x16xi32>
    %58 = arith.cmpi ne, %56, %57 : vector<1x16xi32>
    %59 = arith.andi %55, %58 : vector<1x16xi1>
    %60 = arith.ori %53, %59 : vector<1x16xi1>
    %cst_37 = arith.constant dense<true> : vector<1x16xi1>
    %61 = arith.xori %60, %cst_37 : vector<1x16xi1>
    %cst_38 = arith.constant -1.000000e+09 : f32
    %62 = vector.broadcast %cst_38 : f32 to vector<16x1xf32>
    %63 = arith.select %39, %22, %62 : vector<16x1xi1>, vector<16x1xf32>
    %cst_39 = arith.constant -1.000000e+09 : f32
    %64 = vector.broadcast %cst_39 : f32 to vector<16x1xf32>
    %65 = arith.select %45, %27, %64 : vector<16x1xi1>, vector<16x1xf32>
    %66 = arith.maximumf %63, %65 : vector<16x1xf32>
    %67 = arith.subf %63, %66 : vector<16x1xf32>
    %68 = math.exp %67 : vector<16x1xf32>
    %69 = arith.subf %65, %66 : vector<16x1xf32>
    %70 = math.exp %69 : vector<16x1xf32>
    %71 = arith.addf %68, %70 : vector<16x1xf32>
    %72 = arith.divf %68, %71 : vector<16x1xf32>
    %cst_40 = arith.constant 6.250000e-02 : f32
    %73 = vector.broadcast %cst_40 : f32 to vector<16x1xf32>
    %74 = arith.select %47, %73, %72 : vector<16x1xi1>, vector<16x1xf32>
    %75 = arith.divf %70, %71 : vector<16x1xf32>
    %cst_41 = arith.constant 6.250000e-02 : f32
    %76 = vector.broadcast %cst_41 : f32 to vector<16x1xf32>
    %77 = arith.select %47, %76, %75 : vector<16x1xi1>, vector<16x1xf32>
    %c15_i32_42 = arith.constant 15 : i32
    %78 = tpu.dynamic_rotate %77 by %c15_i32_42 dim 0 : vector<16x1xf32>, i32 -> vector<16x1xf32>
    %79 = arith.mulf %74, %78 : vector<16x1xf32>
    %cst_43 = arith.constant 9.99999971E-10 : f32
    %80 = vector.broadcast %cst_43 : f32 to vector<16x1xf32>
    %81 = arith.addf %79, %80 : vector<16x1xf32>
    %82 = math.sqrt %81 : vector<16x1xf32>
    %cst_44 = arith.constant 6.250000e-02 : f32
    %cst_45 = arith.constant 0.000000e+00 : f32
    %83 = vector.broadcast %cst_44 : f32 to vector<16x1xf32>
    %84 = vector.broadcast %cst_45 : f32 to vector<16x1xf32>
    %85 = arith.select %47, %83, %84 : vector<16x1xi1>, vector<16x1xf32>
    %86 = arith.mulf %85, %85 : vector<16x1xf32>
    %cst_46 = arith.constant 9.99999971E-10 : f32
    %87 = vector.broadcast %cst_46 : f32 to vector<16x1xf32>
    %88 = arith.addf %86, %87 : vector<16x1xf32>
    %89 = math.sqrt %88 : vector<16x1xf32>
    %cst_47 = arith.constant 9.99999971E-10 : f32
    %90 = math.sqrt %cst_47 : f32
    %cst_48 = arith.constant 6.250000e-02 : f32
    %cst_49 = arith.constant 6.250000e-02 : f32
    %91 = arith.mulf %cst_48, %cst_49 : f32
    %cst_50 = arith.constant 9.99999971E-10 : f32
    %92 = arith.addf %91, %cst_50 : f32
    %93 = math.sqrt %92 : f32
    %cst_51 = arith.constant 1.000000e+00 : f32
    %94 = vector.broadcast %cst_51 : f32 to vector<16x1xf32>
    %95 = arith.mulf %94, %82 : vector<16x1xf32>
    %cst_52 = arith.constant 0.000000e+00 : f32
    %96 = vector.broadcast %cst_52 : f32 to vector<16x1xf32>
    %97 = arith.addf %96, %95 : vector<16x1xf32>
    %cst_53 = arith.constant 1.000000e+00 : f32
    %98 = vector.broadcast %cst_53 : f32 to vector<16x1xf32>
    %99 = arith.mulf %98, %89 : vector<16x1xf32>
    %cst_54 = arith.constant 0.000000e+00 : f32
    %100 = vector.broadcast %cst_54 : f32 to vector<16x1xf32>
    %101 = arith.addf %100, %99 : vector<16x1xf32>
    %cst_55 = arith.constant 1.000000e+00 : f32
    %102 = arith.mulf %cst_55, %90 : f32
    %cst_56 = arith.constant 0.000000e+00 : f32
    %103 = arith.addf %cst_56, %102 : f32
    %cst_57 = arith.constant 1.000000e+00 : f32
    %104 = arith.mulf %cst_57, %93 : f32
    %cst_58 = arith.constant 0.000000e+00 : f32
    %105 = arith.addf %cst_58, %104 : f32
    %106 = tpu.iota {dimensions = array<i32: 0>} : vector<16x16xi32>
    %107 = tpu.iota {dimensions = array<i32: 1>} : vector<16x16xi32>
    %c1_i32_59 = arith.constant 1 : i32
    %108 = vector.broadcast %c1_i32_59 : i32 to vector<16x16xi32>
    %109 = arith.addi %106, %108 : vector<16x16xi32>
    %110 = arith.cmpi eq, %107, %109 : vector<16x16xi32>
    %c1_i32_60 = arith.constant 1 : i32
    %111 = vector.broadcast %c1_i32_60 : i32 to vector<16x16xi32>
    %112 = arith.subi %106, %111 : vector<16x16xi32>
    %113 = arith.cmpi eq, %107, %112 : vector<16x16xi32>
    %114 = arith.cmpi eq, %107, %106 : vector<16x16xi32>
    %115 = arith.cmpi sgt, %107, %106 : vector<16x16xi32>
    %116 = vector.broadcast %47 : vector<16x1xi1> to vector<16x16xi1>
    %117 = vector.broadcast %61 : vector<1x16xi1> to vector<16x16xi1>
    %118 = arith.andi %116, %117 : vector<16x16xi1>
    %119 = vector.broadcast %105 : f32 to vector<16x16xf32>
    %120 = vector.broadcast %103 : f32 to vector<16x16xf32>
    %121 = arith.select %118, %119, %120 : vector<16x16xi1>, vector<16x16xf32>
    %c1_i32_61 = arith.constant 1 : i32
    %122 = tpu.dynamic_rotate %97 by %c1_i32_61 dim 0 : vector<16x1xf32>, i32 -> vector<16x1xf32>
    %123 = vector.shape_cast %101 : vector<16x1xf32> to vector<16x1xf32>
    %124 = vector.broadcast %123 : vector<16x1xf32> to vector<16x16xf32>
    %125 = arith.select %114, %124, %121 : vector<16x16xi1>, vector<16x16xf32>
    %126 = vector.shape_cast %122 : vector<16x1xf32> to vector<16x1xf32>
    %127 = vector.broadcast %126 : vector<16x1xf32> to vector<16x16xf32>
    %128 = arith.select %113, %127, %125 : vector<16x16xi1>, vector<16x16xf32>
    %129 = vector.shape_cast %97 : vector<16x1xf32> to vector<16x1xf32>
    %130 = vector.broadcast %129 : vector<16x1xf32> to vector<16x16xf32>
    %131 = arith.select %110, %130, %128 : vector<16x16xi1>, vector<16x16xf32>
    %c0_62 = arith.constant 0 : index
    %c0_63 = arith.constant 0 : index
    %c0_64 = arith.constant 0 : index
    %c0_65 = arith.constant 0 : index
    %132 = vector.load %arg10[%c0_62, %c0_63, %c0_64, %c0_65] : memref<1x1x16x16xf32, #tpu.memory_space<vmem>>, vector<1x1x16x16xf32>
    %133 = vector.shape_cast %132 : vector<1x1x16x16xf32> to vector<16x16xf32>
    %134 = vector.shape_cast %131 : vector<16x16xf32> to vector<1x1x16x16xf32>
    tpu.vector_store %arg10[%c0_62, %c0_63, %c0_64, %c0_65], %134 {strides = array<i32>} : memref<1x1x16x16xf32, #tpu.memory_space<vmem>>, vector<1x1x16x16xf32>,
    %c15_i32_66 = arith.constant 15 : i32
    %135 = vector.broadcast %c15_i32_66 : i32 to vector<16x1xi32>
    %136 = arith.cmpi slt, %28, %135 : vector<16x1xi32>
    %cst_67 = arith.constant 9.99999971E-10 : f32
    %137 = vector.broadcast %cst_67 : f32 to vector<16x1xf32>
    %138 = arith.addf %97, %137 : vector<16x1xf32>
    %139 = math.log %138 : vector<16x1xf32>
    %cst_68 = arith.constant 0.000000e+00 : f32
    %140 = vector.broadcast %cst_68 : f32 to vector<16x1xf32>
    %141 = arith.select %136, %139, %140 : vector<16x1xi1>, vector<16x1xf32>
    %142 = arith.extui %115 : vector<16x16xi1> to vector<16x16xi32>
    %143 = arith.sitofp %142 : vector<16x16xi32> to vector<16x16xf32>
    %144 = vector.broadcast %141 : vector<16x1xf32> to vector<16x16xf32>
    %145 = arith.mulf %144, %143 : vector<16x16xf32>
    %cst_69 = arith.constant dense<0.000000e+00> : vector<16xf32>
    %146 = vector.multi_reduction <add>, %145, %cst_69 [0] : vector<16x16xf32> to vector<16xf32>
    %147 = vector.shape_cast %146 : vector<16xf32> to vector<1x16xf32>
    %cst_70 = arith.constant 0.000000e+00 : f32
    %148 = vector.shape_cast %147 : vector<1x16xf32> to vector<1x16xf32>
    %149 = vector.broadcast %148 : vector<1x16xf32> to vector<16x16xf32>
    %150 = vector.broadcast %cst_70 : f32 to vector<16x16xf32>
    %151 = arith.select %114, %149, %150 : vector<16x16xi1>, vector<16x16xf32>
    %cst_71 = arith.constant dense<0.000000e+00> : vector<16xf32>
    %152 = vector.multi_reduction <add>, %151, %cst_71 [1] : vector<16x16xf32> to vector<16xf32>
    %153 = vector.shape_cast %152 : vector<16xf32> to vector<16x1xf32>
    %154 = vector.broadcast %147 : vector<1x16xf32> to vector<16x16xf32>
    %155 = vector.broadcast %153 : vector<16x1xf32> to vector<16x16xf32>
    %156 = arith.subf %154, %155 : vector<16x16xf32>
    %cst_72 = arith.constant 0.000000e+00 : f32
    %157 = vector.broadcast %cst_72 : f32 to vector<16x16xf32>
    %158 = arith.subf %157, %156 : vector<16x16xf32>
    %159 = arith.select %115, %156, %158 : vector<16x16xi1>, vector<16x16xf32>
    %160 = math.exp %159 : vector<16x16xf32>
    %cst_73 = arith.constant 9.99999971E-10 : f32
    %161 = vector.broadcast %cst_73 : f32 to vector<16x16xf32>
    %162 = arith.addf %160, %161 : vector<16x16xf32>
    %163 = vector.shape_cast %101 : vector<16x1xf32> to vector<16x1xf32>
    %164 = vector.broadcast %163 : vector<16x1xf32> to vector<16x16xf32>
    %165 = arith.select %114, %164, %162 : vector<16x16xi1>, vector<16x16xf32>
    %c0_74 = arith.constant 0 : index
    %c0_75 = arith.constant 0 : index
    %c0_76 = arith.constant 0 : index
    %c0_77 = arith.constant 0 : index
    %166 = vector.load %arg9[%c0_74, %c0_75, %c0_76, %c0_77] : memref<1x1x16x16xf32, #tpu.memory_space<vmem>>, vector<1x1x16x16xf32>
    %167 = vector.shape_cast %166 : vector<1x1x16x16xf32> to vector<16x16xf32>
    %168 = vector.shape_cast %165 : vector<16x16xf32> to vector<1x1x16x16xf32>
    tpu.vector_store %arg9[%c0_74, %c0_75, %c0_76, %c0_77], %168 {strides = array<i32>} : memref<1x1x16x16xf32, #tpu.memory_space<vmem>>, vector<1x1x16x16xf32>,
    return
  }
  func.func @transform_0(%arg0: i32, %arg1: i32) -> (i32, i32, i32) {
    %c0_i32 = arith.constant 0 : i32
    %c0_i32_0 = arith.constant 0 : i32
    %c0_i32_1 = arith.constant 0 : i32
    return %arg0, %c0_i32, %c0_i32_0 : i32, i32, i32
  }
  func.func @transform_1(%arg0: i32, %arg1: i32) -> (i32, i32, i32) {
    %c0_i32 = arith.constant 0 : i32
    %c0_i32_0 = arith.constant 0 : i32
    %c0_i32_1 = arith.constant 0 : i32
    return %arg0, %c0_i32, %c0_i32_0 : i32, i32, i32
  }
  func.func @transform_2(%arg0: i32, %arg1: i32) -> (i32, i32, i32) {
    %c0_i32 = arith.constant 0 : i32
    %c0_i32_0 = arith.constant 0 : i32
    %c0_i32_1 = arith.constant 0 : i32
    return %arg0, %c0_i32, %c0_i32_0 : i32, i32, i32
  }
  func.func @transform_3(%arg0: i32, %arg1: i32) -> (i32, i32, i32) {
    %c0_i32 = arith.constant 0 : i32
    %c0_i32_0 = arith.constant 0 : i32
    %c0_i32_1 = arith.constant 0 : i32
    return %arg1, %c0_i32, %c0_i32_0 : i32, i32, i32
  }
  func.func @transform_4(%arg0: i32, %arg1: i32) -> (i32, i32, i32) {
    %c0_i32 = arith.constant 0 : i32
    %c0_i32_0 = arith.constant 0 : i32
    %c0_i32_1 = arith.constant 0 : i32
    return %arg1, %c0_i32, %c0_i32_0 : i32, i32, i32
  }
  func.func @transform_5(%arg0: i32, %arg1: i32) -> (i32, i32, i32) {
    %c0_i32 = arith.constant 0 : i32
    %c0_i32_0 = arith.constant 0 : i32
    %c0_i32_1 = arith.constant 0 : i32
    return %arg1, %c0_i32, %c0_i32_0 : i32, i32, i32
  }
  func.func @transform_6(%arg0: i32, %arg1: i32) -> (i32, i32, i32) {
    %c0_i32 = arith.constant 0 : i32
    %c0_i32_0 = arith.constant 0 : i32
    %c0_i32_1 = arith.constant 0 : i32
    return %arg1, %c0_i32, %c0_i32_0 : i32, i32, i32
  }
  func.func @transform_7(%arg0: i32, %arg1: i32) -> (i32, i32, i32, i32) {
    %c0_i32 = arith.constant 0 : i32
    %c0_i32_0 = arith.constant 0 : i32
    %c0_i32_1 = arith.constant 0 : i32
    return %arg0, %arg1, %c0_i32, %c0_i32_0 : i32, i32, i32, i32
  }
  func.func @transform_8(%arg0: i32, %arg1: i32) -> (i32, i32, i32, i32) {
    %c0_i32 = arith.constant 0 : i32
    %c0_i32_0 = arith.constant 0 : i32
    %c0_i32_1 = arith.constant 0 : i32
    return %arg0, %arg1, %c0_i32, %c0_i32_0 : i32, i32, i32, i32
  }
}

</mosaic_0001>

<llo_original>
// kernel: tpu_custom_call.1
$region0: #{tpu_custom_call.1}
  #allocation0 [shape = 'u32[]', space=smem, size = 0x4, offset = 0x4, fixed_abs, tag = 'smem constant byte address 0x4 - core index']
  #allocation1 [shape = 'u32[144,128]{1,0:T(1,128)}', space=vmem, size = 0x12000, scoped, tag = 'internal scratch']
  %s0 = inlined_call_operand.vmem [shape: s32[2,1,16], index: 0, kind: input, shape index: {}]
  %s1 = inlined_call_operand.vmem [shape: s32[2,16,1], index: 1, kind: input, shape index: {}]
  %s2 = inlined_call_operand.vmem [shape: f32[2,16,32], index: 2, kind: input, shape index: {}]
  %s3 = inlined_call_operand.hbm [shape: f32[2,8,32], index: 3, kind: input, shape index: {}]
  %s4 = inlined_call_operand.vmem [shape: f32[2,1,8], index: 4, kind: input, shape index: {}]
  %s5 = inlined_call_operand.hbm [shape: f32[2,8,32], index: 5, kind: input, shape index: {}]
  %s6 = inlined_call_operand.vmem [shape: f32[2,1,8], index: 6, kind: input, shape index: {}]
  %s7 = inlined_call_operand.hbm [shape: f32[2,2,16,16], index: 7, kind: output, shape index: {0}]
  %s8 = inlined_call_operand.hbm [shape: f32[2,2,16,16], index: 8, kind: output, shape index: {1}]
  %9 = xla_tuple %s7, %s8
  %s10 = sld [smem:[#allocation0]]
  $region77: #{tpu_custom_call.1} parent=0
    _
  %s12 = ssub.s32 1, %s10
  %s13 = scalar_select 0, %s12, %s10
  $region1: #{tpu_custom_call.1} parent=0
    #allocation2 [shape = 'u8[8192]{0}', space=vmem, size = 0x2000, scoped, tag = 'input window, operand 3']
    #allocation3 [shape = 's32[2]{0}', space=sflag, size = 0x8, scoped, tag = 'scoped memory for tpu_custom_call.1']
    #allocation4 [shape = 's32[2]{0}', space=sflag, size = 0x8, scoped, tag = 'scoped memory for tpu_custom_call.1']
    #allocation5 [shape = 'u8[8192]{0}', space=vmem, size = 0x2000, scoped, tag = 'input window, operand 5']
    #allocation6 [shape = 's32[2]{0}', space=sflag, size = 0x8, scoped, tag = 'scoped memory for tpu_custom_call.1']
    #allocation7 [shape = 'u8[16384]{0}', space=vmem, size = 0x4000, scoped, tag = 'output window, operand 0']
    #allocation8 [shape = 'u8[16384]{0}', space=vmem, size = 0x4000, scoped, tag = 'output window, operand 1']
    #allocation9 [shape = 's32[2]{0}', space=sflag, size = 0x8, scoped, tag = 'scoped memory for tpu_custom_call.1']
    %14 = vsyncpa [#allocation3], 0
    %s15 = scalar_lea.sflag [#allocation3], 1
    %16 = vsyncpa %s15, 0
    %17 = vsyncpa [#allocation6], 0
    %s18 = scalar_lea.sflag [#allocation6], 1
    %19 = vsyncpa %s18, 0
    %20 = vsyncpa [#allocation4], 0
    %s21 = scalar_lea.sflag [#allocation4], 1
    %22 = vsyncpa %s21, 0
    %23 = vsyncpa [#allocation9], 0
    %s24 = scalar_lea.sflag [#allocation9], 1
    %25 = vsyncpa %s24, 0
    loop: start=0, step=1, limit=6
    $region2: #{tpu_custom_call.1} parent=1 // loop_pre_header
      _
    $region3: #{tpu_custom_call.1} parent=1 // loop_header
      %s27 = sphi 0, %s31
      %p28 = scmp.ge.s32.totalorder %s27, 6
      %s34 = sphi 0, %s46
      %s35 = sphi 0, %s42
      %s36 = sphi 0, %s34
      %s37 = sphi 0, %s35
      %s38 = sphi 0, %s36
      %s39 = sphi 0, %s37
      %s49 = sphi 0, %s51
      %s52 = sphi 0, %s49
      %s53 = sphi 0, %s52
      %s69 = sphi 0, %s53
      %s75 = sphi 0, %s77
      %s78 = sphi 0, %s75
      %s79 = sphi 0, %s78
      %s95 = sphi 0, %s79
      %s101 = sphi 0, %s103
      %s104 = sphi 0, %s101
      %s105 = sphi 0, %s104
      %s121 = sphi 0, %s105
      %s127 = sphi 0, %s129
      %s130 = sphi 0, %s127
      %s131 = sphi 0, %s130
      %s147 = sphi 0, %s131
      %s153 = sphi 0, %s155
      %s156 = sphi 0, %s153
      %s157 = sphi 0, %s156
      %s173 = sphi 0, %s157
      %s179 = sphi 0, %s181
      %s182 = sphi 0, %s179
      %s183 = sphi 0, %s182
      %s199 = sphi 0, %s183
      %s205 = sphi 0, %s207
      %s208 = sphi 0, %s205
      %s209 = sphi 0, %s208
      %s225 = sphi 0, %s209
      %s233 = sphi 0, %s235
      %s236 = sphi 0, %s233
      %s237 = sphi 0, %s236
      %s253 = sphi 0, %s237
      %s261 = sphi 0, %s263
      %s264 = sphi 0, %s261
      %s265 = sphi 0, %s264
      %s281 = sphi 0, %s265
    $region4: #{tpu_custom_call.1} parent=1 // loop_header_branch
      %30 = sbr.rel (%p28) target = $region8
    $region5: #{tpu_custom_call.1} parent=1 // loop_body
      %s32 = ssub.s32 %s27, 1
      %s33 = ssub.s32 %s27, 2
      %s40 = sadd.s32 1, %s35
      %p41 = scmp.ge.s32.totalorder %s40, 2
      %s42 = scalar_select %p41, 0, %s40
      %s43 = sadd.s32 1, %s34
      %s44 = scalar_select %p41, %s43, %s34
      %p45 = scmp.ge.s32.totalorder %s44, 2
      %s46 = scalar_select %p45, 0, %s44
      %s47 = ssub.s32 %s34, %s46
      %p48 = scmp.eq.s32.totalorder %s47, 0
      %s50 = sadd.s32 %s49, 1
      %s51 = scalar_select %p48, %s49, %s50
      %p54 = pneg %p48
      %p55 = scmp.eq.s32.totalorder %s27, 3
      %p56 = por %p54, %p55
      %p57 = scmp.ne.s32.totalorder %s49, %s52
      %p58 = scmp.eq.s32.totalorder %s27, 0
      %p59 = por %p57, %p58
      %p60 = scmp.ne.s32.totalorder %s49, %s52
      %p61 = scmp.eq.s32.totalorder %s32, 3
      %p62 = por %p60, %p61
      %p63 = scmp.ne.s32.totalorder %s52, %s53
      %p64 = scmp.eq.s32.totalorder %s32, 0
      %p65 = por %p63, %p64
      %p66 = scmp.ne.s32.totalorder %s52, %s53
      %p67 = scmp.eq.s32.totalorder %s33, 3
      %p68 = por %p66, %p67
      %p70 = scmp.ne.s32.totalorder %s53, %s69
      %p71 = scmp.eq.s32.totalorder %s33, 0
      %p72 = por %p70, %p71
      %s73 = ssub.s32 %s34, %s46
      %p74 = scmp.eq.s32.totalorder %s73, 0
      %s76 = sadd.s32 %s75, 1
      %s77 = scalar_select %p74, %s75, %s76
      %p80 = pneg %p74
      %p81 = scmp.eq.s32.totalorder %s27, 3
      %p82 = por %p80, %p81
      %p83 = scmp.ne.s32.totalorder %s75, %s78
      %p84 = scmp.eq.s32.totalorder %s27, 0
      %p85 = por %p83, %p84
      %p86 = scmp.ne.s32.totalorder %s75, %s78
      %p87 = scmp.eq.s32.totalorder %s32, 3
      %p88 = por %p86, %p87
      %p89 = scmp.ne.s32.totalorder %s78, %s79
      %p90 = scmp.eq.s32.totalorder %s32, 0
      %p91 = por %p89, %p90
      %p92 = scmp.ne.s32.totalorder %s78, %s79
      %p93 = scmp.eq.s32.totalorder %s33, 3
      %p94 = por %p92, %p93
      %p96 = scmp.ne.s32.totalorder %s79, %s95
      %p97 = scmp.eq.s32.totalorder %s33, 0
      %p98 = por %p96, %p97
      %s99 = ssub.s32 %s34, %s46
      %p100 = scmp.eq.s32.totalorder %s99, 0
      %s102 = sadd.s32 %s101, 1
      %s103 = scalar_select %p100, %s101, %s102
      %p106 = pneg %p100
      %p107 = scmp.eq.s32.totalorder %s27, 3
      %p108 = por %p106, %p107
      %p109 = scmp.ne.s32.totalorder %s101, %s104
      %p110 = scmp.eq.s32.totalorder %s27, 0
      %p111 = por %p109, %p110
      %p112 = scmp.ne.s32.totalorder %s101, %s104
      %p113 = scmp.eq.s32.totalorder %s32, 3
      %p114 = por %p112, %p113
      %p115 = scmp.ne.s32.totalorder %s104, %s105
      %p116 = scmp.eq.s32.totalorder %s32, 0
      %p117 = por %p115, %p116
      %p118 = scmp.ne.s32.totalorder %s104, %s105
      %p119 = scmp.eq.s32.totalorder %s33, 3
      %p120 = por %p118, %p119
      %p122 = scmp.ne.s32.totalorder %s105, %s121
      %p123 = scmp.eq.s32.totalorder %s33, 0
      %p124 = por %p122, %p123
      %s125 = ssub.s32 %s35, %s42
      %p126 = scmp.eq.s32.totalorder %s125, 0
      %s128 = sadd.s32 %s127, 1
      %s129 = scalar_select %p126, %s127, %s128
      %p132 = pneg %p126
      %p133 = scmp.eq.s32.totalorder %s27, 3
      %p134 = por %p132, %p133
      %p135 = scmp.ne.s32.totalorder %s127, %s130
      %p136 = scmp.eq.s32.totalorder %s27, 0
      %p137 = por %p135, %p136
      %p138 = scmp.ne.s32.totalorder %s127, %s130
      %p139 = scmp.eq.s32.totalorder %s32, 3
      %p140 = por %p138, %p139
      %p141 = scmp.ne.s32.totalorder %s130, %s131
      %p142 = scmp.eq.s32.totalorder %s32, 0
      %p143 = por %p141, %p142
      %p144 = scmp.ne.s32.totalorder %s130, %s131
      %p145 = scmp.eq.s32.totalorder %s33, 3
      %p146 = por %p144, %p145
      %p148 = scmp.ne.s32.totalorder %s131, %s147
      %p149 = scmp.eq.s32.totalorder %s33, 0
      %p150 = por %p148, %p149
      %s151 = ssub.s32 %s35, %s42
      %p152 = scmp.eq.s32.totalorder %s151, 0
      %s154 = sadd.s32 %s153, 1
      %s155 = scalar_select %p152, %s153, %s154
      %p158 = pneg %p152
      %p159 = scmp.eq.s32.totalorder %s27, 3
      %p160 = por %p158, %p159
      %p161 = scmp.ne.s32.totalorder %s153, %s156
      %p162 = scmp.eq.s32.totalorder %s27, 0
      %p163 = por %p161, %p162
      %p164 = scmp.ne.s32.totalorder %s153, %s156
      %p165 = scmp.eq.s32.totalorder %s32, 3
      %p166 = por %p164, %p165
      %p167 = scmp.ne.s32.totalorder %s156, %s157
      %p168 = scmp.eq.s32.totalorder %s32, 0
      %p169 = por %p167, %p168
      %p170 = scmp.ne.s32.totalorder %s156, %s157
      %p171 = scmp.eq.s32.totalorder %s33, 3
      %p172 = por %p170, %p171
      %p174 = scmp.ne.s32.totalorder %s157, %s173
      %p175 = scmp.eq.s32.totalorder %s33, 0
      %p176 = por %p174, %p175
      %s177 = ssub.s32 %s35, %s42
      %p178 = scmp.eq.s32.totalorder %s177, 0
      %s180 = sadd.s32 %s179, 1
      %s181 = scalar_select %p178, %s179, %s180
      %p184 = pneg %p178
      %p185 = scmp.eq.s32.totalorder %s27, 3
      %p186 = por %p184, %p185
      %p187 = scmp.ne.s32.totalorder %s179, %s182
      %p188 = scmp.eq.s32.totalorder %s27, 0
      %p189 = por %p187, %p188
      %p190 = scmp.ne.s32.totalorder %s179, %s182
      %p191 = scmp.eq.s32.totalorder %s32, 3
      %p192 = por %p190, %p191
      %p193 = scmp.ne.s32.totalorder %s182, %s183
      %p194 = scmp.eq.s32.totalorder %s32, 0
      %p195 = por %p193, %p194
      %p196 = scmp.ne.s32.totalorder %s182, %s183
      %p197 = scmp.eq.s32.totalorder %s33, 3
      %p198 = por %p196, %p197
      %p200 = scmp.ne.s32.totalorder %s183, %s199
      %p201 = scmp.eq.s32.totalorder %s33, 0
      %p202 = por %p200, %p201
      %s203 = ssub.s32 %s35, %s42
      %p204 = scmp.eq.s32.totalorder %s203, 0
      %s206 = sadd.s32 %s205, 1
      %s207 = scalar_select %p204, %s205, %s206
      %p210 = pneg %p204
      %p211 = scmp.eq.s32.totalorder %s27, 3
      %p212 = por %p210, %p211
      %p213 = scmp.ne.s32.totalorder %s205, %s208
      %p214 = scmp.eq.s32.totalorder %s27, 0
      %p215 = por %p213, %p214
      %p216 = scmp.ne.s32.totalorder %s205, %s208
      %p217 = scmp.eq.s32.totalorder %s32, 3
      %p218 = por %p216, %p217
      %p219 = scmp.ne.s32.totalorder %s208, %s209
      %p220 = scmp.eq.s32.totalorder %s32, 0
      %p221 = por %p219, %p220
      %p222 = scmp.ne.s32.totalorder %s208, %s209
      %p223 = scmp.eq.s32.totalorder %s33, 3
      %p224 = por %p222, %p223
      %p226 = scmp.ne.s32.totalorder %s209, %s225
      %p227 = scmp.eq.s32.totalorder %s33, 0
      %p228 = por %p226, %p227
      %s229 = ssub.s32 %s34, %s46
      %s230 = ssub.s32 %s35, %s42
      %s231 = sor.u32 %s229, %s230
      %p232 = scmp.eq.s32.totalorder %s231, 0
      %s234 = sadd.s32 %s233, 1
      %s235 = scalar_select %p232, %s233, %s234
      %p238 = pneg %p232
      %p239 = scmp.eq.s32.totalorder %s27, 3
      %p240 = por %p238, %p239
      %p241 = scmp.ne.s32.totalorder %s233, %s236
      %p242 = scmp.eq.s32.totalorder %s27, 0
      %p243 = por %p241, %p242
      %p244 = scmp.ne.s32.totalorder %s233, %s236
      %p245 = scmp.eq.s32.totalorder %s32, 3
      %p246 = por %p244, %p245
      %p247 = scmp.ne.s32.totalorder %s236, %s237
      %p248 = scmp.eq.s32.totalorder %s32, 0
      %p249 = por %p247, %p248
      %p250 = scmp.ne.s32.totalorder %s236, %s237
      %p251 = scmp.eq.s32.totalorder %s33, 3
      %p252 = por %p250, %p251
      %p254 = scmp.ne.s32.totalorder %s237, %s253
      %p255 = scmp.eq.s32.totalorder %s33, 0
      %p256 = por %p254, %p255
      %s257 = ssub.s32 %s34, %s46
      %s258 = ssub.s32 %s35, %s42
      %s259 = sor.u32 %s257, %s258
      %p260 = scmp.eq.s32.totalorder %s259, 0
      %s262 = sadd.s32 %s261, 1
      %s263 = scalar_select %p260, %s261, %s262
      %p266 = pneg %p260
      %p267 = scmp.eq.s32.totalorder %s27, 3
      %p268 = por %p266, %p267
      %p269 = scmp.ne.s32.totalorder %s261, %s264
      %p270 = scmp.eq.s32.totalorder %s27, 0
      %p271 = por %p269, %p270
      %p272 = scmp.ne.s32.totalorder %s261, %s264
      %p273 = scmp.eq.s32.totalorder %s32, 3
      %p274 = por %p272, %p273
      %p275 = scmp.ne.s32.totalorder %s264, %s265
      %p276 = scmp.eq.s32.totalorder %s32, 0
      %p277 = por %p275, %p276
      %p278 = scmp.ne.s32.totalorder %s264, %s265
      %p279 = scmp.eq.s32.totalorder %s33, 3
      %p280 = por %p278, %p279
      %p282 = scmp.ne.s32.totalorder %s265, %s281
      %p283 = scmp.eq.s32.totalorder %s33, 0
      %p284 = por %p282, %p283
      %p285 = scmp.le.s32.totalorder 1, %s27
      %p286 = scmp.lt.s32.totalorder %s27, 5
      %p287 = pnand %p285, %p286
      %p288 = pneg %p287
      // Predicated region
      $region9: #{tpu_custom_call.1} parent=5 // pred_check
        _
      $region10: #{tpu_custom_call.1} parent=5 // pred_check_branch
        %290 = sbr.rel (%p287) target = $region12
      $region11: #{tpu_custom_call.1} parent=5 // pred_region
        %s291 = ssub.s32 %s27, 1
      $region12: #{tpu_custom_call.1} parent=5 // pred_fallthru
        _
      %p292 = scmp.lt.s32.totalorder %s27, 4
      // Predicated region
      $region13: #{tpu_custom_call.1} parent=5 // pred_check
        %p293 = pneg %p292
      $region14: #{tpu_custom_call.1} parent=5 // pred_check_branch
        %295 = sbr.rel (%p293) target = $region16
      $region15: #{tpu_custom_call.1} parent=5 // pred_region
        // Predicated region
        $region17: #{tpu_custom_call.1} parent=15 // pred_check
          %p296 = pneg %p59
        $region18: #{tpu_custom_call.1} parent=15 // pred_check_branch
          %298 = sbr.rel (%p296) target = $region20
        $region19: #{tpu_custom_call.1} parent=15 // pred_region
          %p299 = scmp.lt.s32.totalorder %s34, 1
          %s300 = scalar_select %p299, %s34, 1
          %s301 = scalar_lea.vmem %s0, %s300
        $region20: #{tpu_custom_call.1} parent=15 // pred_fallthru
          _
        // Predicated region
        $region21: #{tpu_custom_call.1} parent=15 // pred_check
          %p302 = pneg %p85
        $region22: #{tpu_custom_call.1} parent=15 // pred_check_branch
          %304 = sbr.rel (%p302) target = $region24
        $region23: #{tpu_custom_call.1} parent=15 // pred_region
          %p305 = scmp.lt.s32.totalorder %s34, 1
          %s306 = scalar_select %p305, %s34, 1
          %s307 = smul.addr %s306, 2
          %s308 = smul.addr %s307, 8
          %s309 = scalar_lea.vmem %s1, %s308
        $region24: #{tpu_custom_call.1} parent=15 // pred_fallthru
          _
        // Predicated region
        $region25: #{tpu_custom_call.1} parent=15 // pred_check
          %p310 = pneg %p111
        $region26: #{tpu_custom_call.1} parent=15 // pred_check_branch
          %312 = sbr.rel (%p310) target = $region28
        $region27: #{tpu_custom_call.1} parent=15 // pred_region
          %p313 = scmp.lt.s32.totalorder %s34, 1
          %s314 = scalar_select %p313, %s34, 1
          %s315 = smul.addr %s314, 2
          %s316 = smul.addr %s315, 8
          %s317 = scalar_lea.vmem %s2, %s316
        $region28: #{tpu_custom_call.1} parent=15 // pred_fallthru
          _
        // Predicated region
        $region29: #{tpu_custom_call.1} parent=15 // pred_check
          %p318 = pneg %p137
        $region30: #{tpu_custom_call.1} parent=15 // pred_check_branch
          %320 = sbr.rel (%p318) target = $region32
        $region31: #{tpu_custom_call.1} parent=15 // pred_region
          %s321 = sand.u32 %s127, 1
          %s322 = scalar_lea.sflag [#allocation3], %s321
          %s323 = sand.u32 %s127, 1
          %s324 = smul.addr %s323, 8
          %s325 = scalar_lea.vmem [#allocation2], %s324
          %s327 = ssub.s32 128, 128
          %328 = vsyncadd %s322, %s327
          %s329 = smul.addr %s35, 128
          %s330 = scalar_lea.hbm %s3, %s329
          %s332 = sshll.u32 %s325, 4
          %s333 = int_to_ptr.vmem [resolvable:$true] %s332
          %335 = dma.hbm_to_vmem [thread:$0]  %s330, 128, %s333, %s322
        $region32: #{tpu_custom_call.1} parent=15 // pred_fallthru
          _
        // Predicated region
        $region33: #{tpu_custom_call.1} parent=15 // pred_check
          %p336 = pneg %p163
        $region34: #{tpu_custom_call.1} parent=15 // pred_check_branch
          %338 = sbr.rel (%p336) target = $region36
        $region35: #{tpu_custom_call.1} parent=15 // pred_region
          %p339 = scmp.lt.s32.totalorder %s35, 1
          %s340 = scalar_select %p339, %s35, 1
          %s341 = scalar_lea.vmem %s4, %s340
        $region36: #{tpu_custom_call.1} parent=15 // pred_fallthru
          _
        // Predicated region
        $region37: #{tpu_custom_call.1} parent=15 // pred_check
          %p342 = pneg %p189
        $region38: #{tpu_custom_call.1} parent=15 // pred_check_branch
          %344 = sbr.rel (%p342) target = $region40
        $region39: #{tpu_custom_call.1} parent=15 // pred_region
          %s345 = sand.u32 %s179, 1
          %s346 = scalar_lea.sflag [#allocation6], %s345
          %s347 = sand.u32 %s179, 1
          %s348 = smul.addr %s347, 8
          %s349 = scalar_lea.vmem [#allocation5], %s348
          %s351 = ssub.s32 128, 128
          %352 = vsyncadd %s346, %s351
          %s353 = smul.addr %s35, 128
          %s354 = scalar_lea.hbm %s5, %s353
          %s356 = sshll.u32 %s349, 4
          %s357 = int_to_ptr.vmem [resolvable:$true] %s356
          %359 = dma.hbm_to_vmem [thread:$0]  %s354, 128, %s357, %s346
        $region40: #{tpu_custom_call.1} parent=15 // pred_fallthru
          _
        // Predicated region
        $region41: #{tpu_custom_call.1} parent=15 // pred_check
          %p360 = pneg %p215
        $region42: #{tpu_custom_call.1} parent=15 // pred_check_branch
          %362 = sbr.rel (%p360) target = $region44
        $region43: #{tpu_custom_call.1} parent=15 // pred_region
          %p363 = scmp.lt.s32.totalorder %s35, 1
          %s364 = scalar_select %p363, %s35, 1
          %s365 = scalar_lea.vmem %s6, %s364
        $region44: #{tpu_custom_call.1} parent=15 // pred_fallthru
          _
      $region16: #{tpu_custom_call.1} parent=5 // pred_fallthru
        _
      %p366 = scmp.le.s32.totalorder 1, %s27
      %p367 = scmp.lt.s32.totalorder %s27, 5
      %p368 = pnand %p366, %p367
      %p369 = pneg %p368
      // Predicated region
      $region45: #{tpu_custom_call.1} parent=5 // pred_check
        _
      $region46: #{tpu_custom_call.1} parent=5 // pred_check_branch
        %371 = sbr.rel (%p368) target = $region48
      $region47: #{tpu_custom_call.1} parent=5 // pred_region
        %s372 = ssub.s32 %s27, 1
        %s373 = sand.u32 %s130, 1
        %s374 = scalar_lea.sflag [#allocation3], %s373
        %s375 = sand.u32 %s130, 1
        %s376 = smul.addr %s375, 8
        %s377 = scalar_lea.vmem [#allocation2], %s376
        // Predicated region
        $region49: #{tpu_custom_call.1} parent=47 // pred_check
          %p378 = pneg %p143
        $region50: #{tpu_custom_call.1} parent=47 // pred_check_branch
          %380 = sbr.rel (%p378) target = $region52
        $region51: #{tpu_custom_call.1} parent=47 // pred_region
          %381 = dma.done %s374, 128
        $region52: #{tpu_custom_call.1} parent=47 // pred_fallthru
          _
        %s382 = sand.u32 %s182, 1
        %s383 = scalar_lea.sflag [#allocation6], %s382
        %s384 = sand.u32 %s182, 1
        %s385 = smul.addr %s384, 8
        %s386 = scalar_lea.vmem [#allocation5], %s385
        // Predicated region
        $region53: #{tpu_custom_call.1} parent=47 // pred_check
          %p387 = pneg %p195
        $region54: #{tpu_custom_call.1} parent=47 // pred_check_branch
          %389 = sbr.rel (%p387) target = $region56
        $region55: #{tpu_custom_call.1} parent=47 // pred_region
          %390 = dma.done %s383, 128
        $region56: #{tpu_custom_call.1} parent=47 // pred_fallthru
          _
        %p391 = scmp.lt.s32.totalorder %s36, 1
        %s392 = scalar_select %p391, %s36, 1
        %s393 = scalar_lea.vmem %s0, %s392
        %p394 = pneg %p65
        %p395 = pneg %p62
        %p396 = scmp.lt.s32.totalorder %s36, 1
        %s397 = scalar_select %p396, %s36, 1
        %s398 = smul.addr %s397, 2
        %s399 = smul.addr %s398, 8
        %s400 = scalar_lea.vmem %s1, %s399
        %p401 = pneg %p91
        %p402 = pneg %p88
        %p403 = scmp.lt.s32.totalorder %s36, 1
        %s404 = scalar_select %p403, %s36, 1
        %s405 = smul.addr %s404, 2
        %s406 = smul.addr %s405, 8
        %s407 = scalar_lea.vmem %s2, %s406
        %p408 = pneg %p117
        %p409 = pneg %p114
        %s410 = sand.u32 %s130, 1
        %s411 = scalar_lea.sflag [#allocation3], %s410
        %s412 = sand.u32 %s130, 1
        %s413 = smul.addr %s412, 8
        %s414 = scalar_lea.vmem [#allocation2], %s413
        %p415 = pneg %p143
        %p416 = pneg %p140
        %p417 = scmp.lt.s32.totalorder %s37, 1
        %s418 = scalar_select %p417, %s37, 1
        %s419 = scalar_lea.vmem %s4, %s418
        %p420 = pneg %p169
        %p421 = pneg %p166
        %s422 = sand.u32 %s182, 1
        %s423 = scalar_lea.sflag [#allocation6], %s422
        %s424 = sand.u32 %s182, 1
        %s425 = smul.addr %s424, 8
        %s426 = scalar_lea.vmem [#allocation5], %s425
        %p427 = pneg %p195
        %p428 = pneg %p192
        %p429 = scmp.lt.s32.totalorder %s37, 1
        %s430 = scalar_select %p429, %s37, 1
        %s431 = scalar_lea.vmem %s6, %s430
        %p432 = pneg %p221
        %p433 = pneg %p218
        %p434 = pneg %p249
        %p435 = pneg %p246
        %s436 = sand.u32 %s236, 1
        %s437 = scalar_lea.sflag [#allocation4], %s436
        %s438 = sand.u32 %s236, 1
        %s439 = smul.addr %s438, 16
        %s440 = scalar_lea.vmem [#allocation7], %s439
        %p441 = pneg %p277
        %p442 = pneg %p274
        %s443 = sand.u32 %s264, 1
        %s444 = scalar_lea.sflag [#allocation9], %s443
        %s445 = sand.u32 %s264, 1
        %s446 = smul.addr %s445, 16
        %s447 = scalar_lea.vmem [#allocation8], %s446
        %p448 = scmp.lt.s32.totalorder %s36, 1
        %s449 = scalar_select %p448, %s36, 1
        %s450 = scalar_lea.vmem %s0, %s449
        %p451 = scmp.lt.s32.totalorder %s36, 1
        %s452 = scalar_select %p451, %s36, 1
        %s453 = smul.addr %s452, 2
        %s454 = smul.addr %s453, 8
        %s455 = scalar_lea.vmem %s1, %s454
        %p456 = scmp.lt.s32.totalorder %s36, 1
        %s457 = scalar_select %p456, %s36, 1
        %s458 = smul.addr %s457, 2
        %s459 = smul.addr %s458, 8
        %s460 = scalar_lea.vmem %s2, %s459
        %p461 = scmp.lt.s32.totalorder %s37, 1
        %s462 = scalar_select %p461, %s37, 1
        %s463 = scalar_lea.vmem %s4, %s462
        %p464 = scmp.lt.s32.totalorder %s37, 1
        %s465 = scalar_select %p464, %s37, 1
        %s466 = scalar_lea.vmem %s6, %s465
        %v467 = vld [vmem:[%s460] sm:$0xff]
        %v468 = vld [vmem:[%s460 + $0x8] sm:$0xff]
        %v469 = vld [vmem:[%s377] sm:$0xff]
        %v470 = vld [vmem:[%s463] sm:$0x1]
        %v472 = vlaneseq
        %v473 = vshrl.u32 %v472, 7
        %v474 = vsub.s32 0, %v473
        %v475 = vrot.slane %v470, %v474
        %vm477 = vcmask 261120
        %v479 = vsel %vm477, %v467, 0
        %v482 = vsel %vm477, %v468, 0
        %v485 = vsel %vm477, %v469, 0
        %487 = vmatprep.subr.mxu0 0.0
        %488 = vmatpush1.xpose.msra.mxu0 0.0
        %489 = vmatprep.subr.mxu0 0.0
        %490 = vmatpush1.xpose.msra.mxu0 0.0
        %491 = vmatprep.subr.mxu0 0.0
        %492 = vmatpush1.xpose.msra.mxu0 0.0
        %493 = vmatprep.subr.mxu0 0.0
        %494 = vmatpush1.xpose.msra.mxu0 0.0
        %495 = vmatprep.subr.mxu0 0.0
        %496 = vmatpush1.xpose.msra.mxu0 0.0
        %497 = vmatprep.subr.mxu0 0.0
        %498 = vmatpush1.xpose.msra.mxu0 0.0
        %499 = vmatprep.subr.mxu0 0.0
        %500 = vmatpush1.xpose.msra.mxu0 0.0
        %501 = vmatprep.subr.mxu0 0.0
        %502 = vmatpush1.xpose.msra.mxu0 0.0
        %503 = vmatprep.subr.mxu0 0.0
        %504 = vmatpush1.xpose.msra.mxu0 0.0
        %505 = vmatprep.subr.mxu0 0.0
        %506 = vmatpush1.xpose.msra.mxu0 0.0
        %507 = vmatprep.subr.mxu0 0.0
        %508 = vmatpush1.xpose.msra.mxu0 0.0
        %509 = vmatprep.subr.mxu0 0.0
        %510 = vmatpush1.xpose.msra.mxu0 0.0
        %511 = vmatprep.subr.mxu0 0.0
        %512 = vmatpush1.xpose.msra.mxu0 0.0
        %513 = vmatprep.subr.mxu0 0.0
        %514 = vmatpush1.xpose.msra.mxu0 0.0
        %515 = vmatprep.subr.mxu0 0.0
        %516 = vmatpush1.xpose.msra.mxu0 0.0
        %517 = vmatprep.subr.mxu0 0.0
        %518 = vmatpush1.xpose.msra.mxu0 %v485
        %519 = vmatprep.subr.mxu0 0.0
        %520 = vmatpush2.xpose.msra.mxu0 0.0
        %521 = vmatprep.subr.mxu0 0.0
        %522 = vmatpush2.xpose.msra.mxu0 0.0
        %523 = vmatprep.subr.mxu0 0.0
        %524 = vmatpush2.xpose.msra.mxu0 0.0
        %525 = vmatprep.subr.mxu0 0.0
        %526 = vmatpush2.xpose.msra.mxu0 0.0
        %527 = vmatprep.subr.mxu0 0.0
        %528 = vmatpush2.xpose.msra.mxu0 0.0
        %529 = vmatprep.subr.mxu0 0.0
        %530 = vmatpush2.xpose.msra.mxu0 0.0
        %531 = vmatprep.subr.mxu0 0.0
        %532 = vmatpush2.xpose.msra.mxu0 0.0
        %533 = vmatprep.subr.mxu0 0.0
        %534 = vmatpush2.xpose.msra.mxu0 0.0
        %535 = vmatprep.subr.mxu0 0.0
        %536 = vmatpush2.xpose.msra.mxu0 0.0
        %537 = vmatprep.subr.mxu0 0.0
        %538 = vmatpush2.xpose.msra.mxu0 0.0
        %539 = vmatprep.subr.mxu0 0.0
        %540 = vmatpush2.xpose.msra.mxu0 0.0
        %541 = vmatprep.subr.mxu0 0.0
        %542 = vmatpush2.xpose.msra.mxu0 0.0
        %543 = vmatprep.subr.mxu0 0.0
        %544 = vmatpush2.xpose.msra.mxu0 0.0
        %545 = vmatprep.subr.mxu0 0.0
        %546 = vmatpush2.xpose.msra.mxu0 0.0
        %547 = vmatprep.subr.mxu0 0.0
        %548 = vmatpush2.xpose.msra.mxu0 0.0
        %549 = vmatprep.subr.mxu0 0.0
        %550 = vmatpush2.xpose.msra.mxu0 0.0
        %551 = vmatprep.mubr.f32.mxu0 0.0
        %552 = vmatmul.mubr.f32.gmra.mxu0 %v479
        %v553 = vpop.f32.mrf.mxu0
        %v554 = vadd.f32 %v475, %v553
        %v555 = vpop.f32.mrf.mxu0
        %556 = vmatprep.mubr.f32.mxu0 0.0
        %557 = vmatmul.mubr.f32.gmra.mxu0 %v482
        %v558 = vpop.f32.mrf.mxu0
        %v559 = vadd.f32 %v475, %v558
        %v560 = vpop.f32.mrf.mxu0
        %561 = vdwg.mxu0
        %v562 = vld [vmem:[%s386] sm:$0xff]
        %v563 = vld [vmem:[%s466] sm:$0x1]
        %v565 = vlaneseq
        %v566 = vshrl.u32 %v565, 7
        %v567 = vsub.s32 0, %v566
        %v568 = vrot.slane %v563, %v567
        %v571 = vsel %vm477, %v562, 0
        %573 = vmatprep.subr.mxu0 0.0
        %574 = vmatpush1.xpose.msra.mxu0 0.0
        %575 = vmatprep.subr.mxu0 0.0
        %576 = vmatpush1.xpose.msra.mxu0 0.0
        %577 = vmatprep.subr.mxu0 0.0
        %578 = vmatpush1.xpose.msra.mxu0 0.0
        %579 = vmatprep.subr.mxu0 0.0
        %580 = vmatpush1.xpose.msra.mxu0 0.0
        %581 = vmatprep.subr.mxu0 0.0
        %582 = vmatpush1.xpose.msra.mxu0 0.0
        %583 = vmatprep.subr.mxu0 0.0
        %584 = vmatpush1.xpose.msra.mxu0 0.0
        %585 = vmatprep.subr.mxu0 0.0
        %586 = vmatpush1.xpose.msra.mxu0 0.0
        %587 = vmatprep.subr.mxu0 0.0
        %588 = vmatpush1.xpose.msra.mxu0 0.0
        %589 = vmatprep.subr.mxu0 0.0
        %590 = vmatpush1.xpose.msra.mxu0 0.0
        %591 = vmatprep.subr.mxu0 0.0
        %592 = vmatpush1.xpose.msra.mxu0 0.0
        %593 = vmatprep.subr.mxu0 0.0
        %594 = vmatpush1.xpose.msra.mxu0 0.0
        %595 = vmatprep.subr.mxu0 0.0
        %596 = vmatpush1.xpose.msra.mxu0 0.0
        %597 = vmatprep.subr.mxu0 0.0
        %598 = vmatpush1.xpose.msra.mxu0 0.0
        %599 = vmatprep.subr.mxu0 0.0
        %600 = vmatpush1.xpose.msra.mxu0 0.0
        %601 = vmatprep.subr.mxu0 0.0
        %602 = vmatpush1.xpose.msra.mxu0 0.0
        %603 = vmatprep.subr.mxu0 0.0
        %604 = vmatpush1.xpose.msra.mxu0 %v571
        %605 = vmatprep.subr.mxu0 0.0
        %606 = vmatpush2.xpose.msra.mxu0 0.0
        %607 = vmatprep.subr.mxu0 0.0
        %608 = vmatpush2.xpose.msra.mxu0 0.0
        %609 = vmatprep.subr.mxu0 0.0
        %610 = vmatpush2.xpose.msra.mxu0 0.0
        %611 = vmatprep.subr.mxu0 0.0
        %612 = vmatpush2.xpose.msra.mxu0 0.0
        %613 = vmatprep.subr.mxu0 0.0
        %614 = vmatpush2.xpose.msra.mxu0 0.0
        %615 = vmatprep.subr.mxu0 0.0
        %616 = vmatpush2.xpose.msra.mxu0 0.0
        %617 = vmatprep.subr.mxu0 0.0
        %618 = vmatpush2.xpose.msra.mxu0 0.0
        %619 = vmatprep.subr.mxu0 0.0
        %620 = vmatpush2.xpose.msra.mxu0 0.0
        %621 = vmatprep.subr.mxu0 0.0
        %622 = vmatpush2.xpose.msra.mxu0 0.0
        %623 = vmatprep.subr.mxu0 0.0
        %624 = vmatpush2.xpose.msra.mxu0 0.0
        %625 = vmatprep.subr.mxu0 0.0
        %626 = vmatpush2.xpose.msra.mxu0 0.0
        %627 = vmatprep.subr.mxu0 0.0
        %628 = vmatpush2.xpose.msra.mxu0 0.0
        %629 = vmatprep.subr.mxu0 0.0
        %630 = vmatpush2.xpose.msra.mxu0 0.0
        %631 = vmatprep.subr.mxu0 0.0
        %632 = vmatpush2.xpose.msra.mxu0 0.0
        %633 = vmatprep.subr.mxu0 0.0
        %634 = vmatpush2.xpose.msra.mxu0 0.0
        %635 = vmatprep.subr.mxu0 0.0
        %636 = vmatpush2.xpose.msra.mxu0 0.0
        %637 = vmatprep.mubr.f32.mxu0 0.0
        %638 = vmatmul.mubr.f32.gmra.mxu0 %v479
        %v639 = vpop.f32.mrf.mxu0
        %v640 = vadd.f32 %v568, %v639
        %v641 = vpop.f32.mrf.mxu0
        %642 = vmatprep.mubr.f32.mxu0 0.0
        %643 = vmatmul.mubr.f32.gmra.mxu0 %v482
        %v644 = vpop.f32.mrf.mxu0
        %v645 = vadd.f32 %v568, %v644
        %v646 = vpop.f32.mrf.mxu0
        %647 = vdwg.mxu0
        %v648 = vrot.slane %v640, 1
        %v649 = vrot.slane %v645, 1
        %v650 = vlaneseq
        %v651 = vshrl.u32 %v650, 7
        %vm652 = vcmp.lt.s32.totalorder %v651, 7
        %v653 = vsel %vm652, %v648, %v649
        %v654 = vsel %vm652, %v649, %v648
        %v655 = vrot.slane %v640, 7
        %v656 = vrot.slane %v645, 7
        %vm657 = vcmp.lt.s32.totalorder %v651, 1
        %v658 = vsel %vm657, %v655, %v656
        %v659 = vsel %vm657, %v656, %v655
        %v660 = vmul.f32 %v554, %v653
        %v661 = vmul.f32 %v559, %v654
        %vm662 = vcmask 64512
        %v663 = vsel %vm662, %v660, 0.0
        %664 = vadd.xlane.f32.xlu0 %v663
        %v665 = vpop.xlane.xlu0 %664
        %v666 = vsel %vm662, %v661, 0.0
        %667 = vadd.xlane.f32.xlu0 %v666
        %v668 = vpop.xlane.xlu0 %667
        %v669 = vmul.f32 %v665, 0.03125
        %v670 = vmul.f32 %v668, 0.03125
        %v671 = vmul.f32 %v554, %v659
        %v672 = vmul.f32 %v559, %v658
        %v673 = vsel %vm662, %v671, 0.0
        %674 = vadd.xlane.f32.xlu0 %v673
        %v675 = vpop.xlane.xlu0 %674
        %v676 = vsel %vm662, %v672, 0.0
        %677 = vadd.xlane.f32.xlu0 %v676
        %v678 = vpop.xlane.xlu0 %677
        %v679 = vmul.f32 %v675, 0.03125
        %v680 = vmul.f32 %v678, 0.03125
        %v681 = vadd.s32 %v651, 8
        %v682 = vlaneseq
        %v683 = vand.u32 %v682, 127
        %v684 = vld [vmem:[%s455] sm:$0xff]
        %v685 = vld [vmem:[%s455 + $0x8] sm:$0xff]
        %v686 = vld [vmem:[%s450] sm:$0x1]
        %vm687 = vcmp.lt.s32.totalorder %v651, 15
        %vm688 = vcmp.lt.s32.totalorder %v681, 15
        %v689 = vrot.slane %v684, 1
        %v690 = vrot.slane %v685, 1
        %v691 = vsel %vm652, %v689, %v690
        %v692 = vsel %vm652, %v690, %v689
        %vm693 = vcmp.ne.s32.totalorder %v691, 0
        %vm694 = vcmp.ne.s32.totalorder %v692, 0
        %vm695 = vmand %vm687, %vm693
        %vm696 = vmand %vm688, %vm694
        %vm697 = vcmp.gt.s32.totalorder %v651, 0
        %vm698 = vcmp.gt.s32.totalorder %v681, 0
        %v699 = vrot.slane %v684, 7
        %v700 = vrot.slane %v685, 7
        %v701 = vsel %vm657, %v699, %v700
        %v702 = vsel %vm657, %v700, %v699
        %vm703 = vcmp.ne.s32.totalorder %v702, 0
        %vm704 = vcmp.ne.s32.totalorder %v701, 0
        %vm705 = vmand %vm697, %vm703
        %vm706 = vmand %vm698, %vm704
        %vm707 = vmor %vm695, %vm705
        %vm708 = vmor %vm696, %vm706
        %vm709 = vmxor %vm707, 1
        %vm710 = vmxor %vm708, 1
        %vm711 = vcmp.lt.s32.totalorder %v683, 15
        %vm712 = vcmask 1047680
        %713 = vrot.lane.b32.xlu0 %v686, 16
        %v714 = vpop.permute.xlu0 %713
        %v715 = vsel %vm712, %v714, %v686
        %716 = vrot.lane.b32.xlu0 %v715, 16
        %v717 = vpop.permute.xlu0 %716
        %v718 = vsel %vm712, %v717, %v686
        %vm719 = vcmp.ne.s32.totalorder %v718, 0
        %v720 = vsel %vm719, 1, 0
        %721 = vrot.lane.b32.xlu0 %v720, 127
        %v722 = vpop.permute.xlu0 %721
        %vm723 = vcmp.ne.s32.totalorder %v722, 0
        %vm724 = vmand %vm711, %vm723
        %vm725 = vcmp.gt.s32.totalorder %v683, 0
        %726 = vrot.lane.b32.xlu0 %v720, 113
        %v727 = vpop.permute.xlu0 %726
        %vm728 = vcmp.ne.s32.totalorder %v727, 0
        %vm729 = vmand %vm725, %vm728
        %vm730 = vmor %vm724, %vm729
        %vm731 = vmxor %vm730, 1
        %v732 = vsel %vm695, %v669, -1e+09
        %v733 = vsel %vm696, %v670, -1e+09
        %v734 = vsel %vm705, %v679, -1e+09
        %v735 = vsel %vm706, %v680, -1e+09
        %v736 = vmax.f32 %v732, %v734
        %v737 = vmax.f32 %v733, %v735
        %v738 = vsub.f32 %v732, %v736
        %v739 = vsub.f32 %v733, %v737
        %v740 = vmul.f32 %v738, 1.442695
        %v741 = vpow.pop %v740
        %v742 = vmul.f32 %v739, 1.442695
        %v743 = vpow.pop %v742
        %v744 = vsub.f32 %v734, %v736
        %v745 = vsub.f32 %v735, %v737
        %v746 = vmul.f32 %v744, 1.442695
        %v747 = vpow.pop %v746
        %v748 = vmul.f32 %v745, 1.442695
        %v749 = vpow.pop %v748
        %v750 = vadd.f32 %v741, %v747
        %v751 = vadd.f32 %v743, %v749
        %v752 = vrcp.pop %v750
        %v753 = vmul.f32 %v741, %v752
        %v754 = vrcp.pop %v751
        %v755 = vmul.f32 %v743, %v754
        %v756 = vsel %vm709, 0.0625, %v753
        %v757 = vsel %vm710, 0.0625, %v755
        %v758 = vmul.f32 %v747, %v752
        %v759 = vmul.f32 %v749, %v754
        %v760 = vsel %vm709, 0.0625, %v758
        %v761 = vsel %vm710, 0.0625, %v759
        %v762 = vrot.slane %v760, 1
        %v763 = vrot.slane %v761, 1
        %v764 = vsel %vm652, %v762, %v763
        %v765 = vsel %vm652, %v763, %v762
        %v766 = vmul.f32 %v756, %v764
        %v767 = vmul.f32 %v757, %v765
        %v768 = vadd.f32 %v766, 1e-09
        %v769 = vadd.f32 %v767, 1e-09
        %v770 = vrsqrt.pop %v768
        %v771 = vmul.f32 %v768, %v770
        %vm772 = vcmp.eq.f32.partialorder %v768, inf
        %v773 = vsel %vm772, %v768, %v771
        %vm774 = vcmp.eq.f32.partialorder %v768, 0.0
        %v775 = vand.u32 %v768, 2147483648
        %v776 = vsel %vm774, %v775, %v773
        %v777 = vrsqrt.pop %v769
        %v778 = vmul.f32 %v769, %v777
        %vm779 = vcmp.eq.f32.partialorder %v769, inf
        %v780 = vsel %vm779, %v769, %v778
        %vm781 = vcmp.eq.f32.partialorder %v769, 0.0
        %v782 = vand.u32 %v769, 2147483648
        %v783 = vsel %vm781, %v782, %v780
        %v784 = vsel %vm709, 0.0625, 0.0
        %v785 = vsel %vm710, 0.0625, 0.0
        %v786 = vmul.f32 %v784, %v784
        %v787 = vmul.f32 %v785, %v785
        %v788 = vadd.f32 %v786, 1e-09
        %v789 = vadd.f32 %v787, 1e-09
        %v790 = vrsqrt.pop %v788
        %v791 = vmul.f32 %v788, %v790
        %vm792 = vcmp.eq.f32.partialorder %v788, inf
        %v793 = vsel %vm792, %v788, %v791
        %vm794 = vcmp.eq.f32.partialorder %v788, 0.0
        %v795 = vand.u32 %v788, 2147483648
        %v796 = vsel %vm794, %v795, %v793
        %v797 = vrsqrt.pop %v789
        %v798 = vmul.f32 %v789, %v797
        %vm799 = vcmp.eq.f32.partialorder %v789, inf
        %v800 = vsel %vm799, %v789, %v798
        %vm801 = vcmp.eq.f32.partialorder %v789, 0.0
        %v802 = vand.u32 %v789, 2147483648
        %v803 = vsel %vm801, %v802, %v800
        %v804 = vadd.f32 %v776, 0.0
        %v805 = vadd.f32 %v783, 0.0
        %v806 = vadd.f32 %v796, 0.0
        %v807 = vadd.f32 %v803, 0.0
        %v808 = vadd.s32 %v651, 1
        %v809 = vadd.s32 %v681, 1
        %vm810 = vcmp.eq.s32.totalorder %v683, %v808
        %vm811 = vcmp.eq.s32.totalorder %v683, %v809
        %v812 = vsub.s32 %v651, 1
        %v813 = vsub.s32 %v681, 1
        %vm814 = vcmp.eq.s32.totalorder %v683, %v812
        %vm815 = vcmp.eq.s32.totalorder %v683, %v813
        %vm816 = vcmp.eq.s32.totalorder %v683, %v651
        %vm817 = vcmp.eq.s32.totalorder %v683, %v681
        %vm818 = vcmp.gt.s32.totalorder %v683, %v651
        %vm819 = vcmp.gt.s32.totalorder %v683, %v681
        %v820 = vsel %vm709, 1, 0
        %v821 = vsel %vm710, 1, 0
        %822 = vset.pattern.permute.xlu0 0
        %823 = vperm.xlu0 %822, %v820
        %v824 = vpop.permute.xlu0 %823
        %825 = vset.pattern.permute.xlu0 0
        %826 = vperm.xlu0 %825, %v821
        %v827 = vpop.permute.xlu0 %826
        %vm828 = vcmp.eq.s32.totalorder %v824, 1
        %vm829 = vcmp.eq.s32.totalorder %v827, 1
        %v830 = vsel %vm731, 1, 0
        %v831 = vlaneseq
        %v832 = vshrl.u32 %v831, 7
        %v833 = vsub.s32 0, %v832
        %v834 = vrot.slane %v830, %v833
        %vm835 = vcmp.eq.s32.totalorder %v834, 1
        %vm836 = vmand %vm828, %vm835
        %vm837 = vmand %vm829, %vm835
        %v838 = vsel %vm836, 0.06250001, 3.1622778e-05
        %v839 = vsel %vm837, 0.06250001, 3.1622778e-05
        %v840 = vrot.slane %v804, 7
        %v841 = vrot.slane %v805, 7
        %v842 = vsel %vm657, %v840, %v841
        %v843 = vsel %vm657, %v841, %v840
        %845 = vset.pattern.permute.xlu0 0
        %846 = vperm.xlu0 %845, %v806
        %v847 = vpop.permute.xlu0 %846
        %850 = vset.pattern.permute.xlu0 0
        %851 = vperm.xlu0 %850, %v807
        %v852 = vpop.permute.xlu0 %851
        %v854 = vsel %vm816, %v847, %v838
        %v855 = vsel %vm817, %v852, %v839
        %857 = vset.pattern.permute.xlu0 0
        %858 = vperm.xlu0 %857, %v843
        %v859 = vpop.permute.xlu0 %858
        %862 = vset.pattern.permute.xlu0 0
        %863 = vperm.xlu0 %862, %v842
        %v864 = vpop.permute.xlu0 %863
        %v866 = vsel %vm814, %v859, %v854
        %v867 = vsel %vm815, %v864, %v855
        %869 = vset.pattern.permute.xlu0 0
        %870 = vperm.xlu0 %869, %v804
        %v871 = vpop.permute.xlu0 %870
        %874 = vset.pattern.permute.xlu0 0
        %875 = vperm.xlu0 %874, %v805
        %v876 = vpop.permute.xlu0 %875
        %v878 = vsel %vm810, %v871, %v866
        %v879 = vsel %vm811, %v876, %v867
        %vm880 = vcmask 130048
        %881 = vst.msk [vmem:[%s447] sm:$0xff] %vm880, %v878
        %882 = vst.msk [vmem:[%s447 + $0x8] sm:$0xff] %vm880, %v879
        %v883 = vadd.f32 %v804, 1e-09
        %v884 = vadd.f32 %v805, 1e-09
        %v885 = vlog2.pop %v883
        %v886 = vmul.f32 %v885, 0.6931472
        %v887 = vlog2.pop %v884
        %v888 = vmul.f32 %v887, 0.6931472
        %v889 = vsel %vm687, %v886, 0.0
        %v890 = vsel %vm688, %v888, 0.0
        %v891 = vsel %vm818, 1, 0
        %v892 = vsel %vm819, 1, 0
        %v893 = vcvt.s32.f32 %v891
        %v894 = vcvt.s32.f32 %v892
        %896 = vset.pattern.permute.xlu0 0
        %897 = vperm.xlu0 %896, %v889
        %v898 = vpop.permute.xlu0 %897
        %901 = vset.pattern.permute.xlu0 0
        %902 = vperm.xlu0 %901, %v890
        %v903 = vpop.permute.xlu0 %902
        %v905 = vmul.f32 %v898, %v893
        %v906 = vmul.f32 %v903, %v894
        %v907 = vsel %vm880, %v905, 0.0
        %v908 = vsel %vm880, %v906, 0.0
        %v909 = vadd.f32 %v907, %v908
        %v910 = vrot.slane %v909, 4
        %v911 = vadd.f32 %v909, %v910
        %v912 = vrot.slane %v911, 2
        %v913 = vadd.f32 %v911, %v912
        %v914 = vrot.slane %v913, 1
        %v915 = vadd.f32 %v913, %v914
        %v916 = vsel %vm816, %v915, 0.0
        %v917 = vsel %vm817, %v915, 0.0
        %v918 = vsel %vm880, %v916, 0.0
        %919 = vadd.xlane.f32.xlu0 %v918
        %v920 = vpop.xlane.xlu0 %919
        %v921 = vsel %vm880, %v917, 0.0
        %922 = vadd.xlane.f32.xlu0 %v921
        %v923 = vpop.xlane.xlu0 %922
        %v924 = vsub.f32 %v915, %v920
        %v925 = vsub.f32 %v915, %v923
        %v926 = vsub.f32 0.0, %v924
        %v927 = vsub.f32 0.0, %v925
        %v928 = vsel %vm818, %v924, %v926
        %v929 = vsel %vm819, %v925, %v927
        %v930 = vmul.f32 %v928, 1.442695
        %v931 = vpow.pop %v930
        %v932 = vmul.f32 %v929, 1.442695
        %v933 = vpow.pop %v932
        %v934 = vadd.f32 %v931, 1e-09
        %v935 = vadd.f32 %v933, 1e-09
        %v936 = vsel %vm816, %v847, %v934
        %v937 = vsel %vm817, %v852, %v935
        %938 = vst.msk [vmem:[%s440] sm:$0xff] %vm880, %v936
        %939 = vst.msk [vmem:[%s440 + $0x8] sm:$0xff] %vm880, %v937
        %s940 = sand.u32 %s236, 1
        %s941 = scalar_lea.sflag [#allocation4], %s940
        %s942 = sand.u32 %s236, 1
        %s943 = smul.addr %s942, 16
        %s944 = scalar_lea.vmem [#allocation7], %s943
        %s945 = sand.u32 %s264, 1
        %s946 = scalar_lea.sflag [#allocation9], %s945
        %s947 = sand.u32 %s264, 1
        %s948 = smul.addr %s947, 16
        %s949 = scalar_lea.vmem [#allocation8], %s948
        // Predicated region
        $region57: #{tpu_custom_call.1} parent=47 // pred_check
          %p950 = pneg %p246
        $region58: #{tpu_custom_call.1} parent=47 // pred_check_branch
          %952 = sbr.rel (%p950) target = $region60
        $region59: #{tpu_custom_call.1} parent=47 // pred_region
          %s954 = ssub.s32 256, 256
          %955 = vsyncadd %s941, %s954
          %s956 = smul.addr %s37, 2
          %s957 = smul.addr %s36, 4
          %s958 = sadd.s32 %s956, %s957
          %s959 = smul.addr %s958, 128
          %s960 = scalar_lea.hbm %s7, %s959
          %s961 = sshll.u32 %s944, 4
          %s962 = int_to_ptr.vmem [resolvable:$true] %s961
          %967 = dma.vmem_to_hbm [thread:$0]  %s962, 256, %s960, %s941, 128, 128, 8
        $region60: #{tpu_custom_call.1} parent=47 // pred_fallthru
          _
        // Predicated region
        $region61: #{tpu_custom_call.1} parent=47 // pred_check
          %p968 = pneg %p274
        $region62: #{tpu_custom_call.1} parent=47 // pred_check_branch
          %970 = sbr.rel (%p968) target = $region64
        $region63: #{tpu_custom_call.1} parent=47 // pred_region
          %s972 = ssub.s32 256, 256
          %973 = vsyncadd %s946, %s972
          %s974 = smul.addr %s37, 2
          %s975 = smul.addr %s36, 4
          %s976 = sadd.s32 %s974, %s975
          %s977 = smul.addr %s976, 128
          %s978 = scalar_lea.hbm %s8, %s977
          %s979 = sshll.u32 %s949, 4
          %s980 = int_to_ptr.vmem [resolvable:$true] %s979
          %985 = dma.vmem_to_hbm [thread:$0]  %s980, 256, %s978, %s946, 128, 128, 8
        $region64: #{tpu_custom_call.1} parent=47 // pred_fallthru
          _
      $region48: #{tpu_custom_call.1} parent=5 // pred_fallthru
        _
      %p986 = scmp.le.s32.totalorder 2, %s27
      // Predicated region
      $region65: #{tpu_custom_call.1} parent=5 // pred_check
        %p987 = pneg %p986
      $region66: #{tpu_custom_call.1} parent=5 // pred_check_branch
        %989 = sbr.rel (%p987) target = $region68
      $region67: #{tpu_custom_call.1} parent=5 // pred_region
        %s990 = ssub.s32 %s27, 2
        // Predicated region
        $region69: #{tpu_custom_call.1} parent=67 // pred_check
          %p991 = pneg %p252
        $region70: #{tpu_custom_call.1} parent=67 // pred_check_branch
          %993 = sbr.rel (%p991) target = $region72
        $region71: #{tpu_custom_call.1} parent=67 // pred_region
          %s994 = sand.u32 %s237, 1
          %s995 = scalar_lea.sflag [#allocation4], %s994
          %s996 = sand.u32 %s237, 1
          %s997 = smul.addr %s996, 16
          %s998 = scalar_lea.vmem [#allocation7], %s997
          %999 = dma.done %s995, 256
        $region72: #{tpu_custom_call.1} parent=67 // pred_fallthru
          _
        // Predicated region
        $region73: #{tpu_custom_call.1} parent=67 // pred_check
          %p1000 = pneg %p280
        $region74: #{tpu_custom_call.1} parent=67 // pred_check_branch
          %1002 = sbr.rel (%p1000) target = $region76
        $region75: #{tpu_custom_call.1} parent=67 // pred_region
          %s1003 = sand.u32 %s265, 1
          %s1004 = scalar_lea.sflag [#allocation9], %s1003
          %s1005 = sand.u32 %s265, 1
          %s1006 = smul.addr %s1005, 16
          %s1007 = scalar_lea.vmem [#allocation8], %s1006
          %1008 = dma.done %s1004, 256
        $region76: #{tpu_custom_call.1} parent=67 // pred_fallthru
          _
      $region68: #{tpu_custom_call.1} parent=5 // pred_fallthru
        _
    $region6: #{tpu_custom_call.1} parent=1 // loop_footer
      %s31 = sadd.s32 1, %s27
    $region7: #{tpu_custom_call.1} parent=1 // loop_footer_branch
      %26 = sbr.rel target = $region3
    $region8: #{tpu_custom_call.1} parent=1 // loop_exit
      _
    %1009 = vsyncpa [#allocation3], 1
    %s1010 = scalar_lea.sflag [#allocation3], 1
    %1011 = vsyncpa %s1010, 1
    %1012 = vsyncpa [#allocation6], 1
    %s1013 = scalar_lea.sflag [#allocation6], 1
    %1014 = vsyncpa %s1013, 1
    %1015 = vsyncpa [#allocation4], 1
    %s1016 = scalar_lea.sflag [#allocation4], 1
    %1017 = vsyncpa %s1016, 1
    %1018 = vsyncpa [#allocation9], 1
    %s1019 = scalar_lea.sflag [#allocation9], 1
    %1020 = vsyncpa %s1019, 1

</llo_original>
